<compile_context>
chip_gen: v5e
topology: v5e:2x2
jax: 0.10.0
libtpu: 0.0.40
codegen_flags: <defaults>
</compile_context>

<pallas_src>
import jax
import jax.numpy as jnp
from jax import lax
from jax.experimental import pallas as pl
from jax.experimental.pallas import tpu as pltpu


def _round_up(n: int, m: int) -> int:
    return ((n + m - 1) // m) * m


def _periodic_kernel(x_ref, w_ref, phase_ref, out_ref):
    # x_ref:     (TB, F)      batch tile of x
    # w_ref:     (F, F*2K)    block-diagonal 2*pi*coeff expansion (VMEM resident)
    # phase_ref: (1, F*2K)    pi/2 on cos lanes, 0 on sin lanes (VMEM resident)
    # out_ref:   (TB, F*2K)   lane-dense output tile
    x = x_ref[...].astype(jnp.float32)
    u = jnp.dot(
        x,
        w_ref[...],
        preferred_element_type=jnp.float32,
        precision=lax.Precision.HIGHEST,
    )  # (TB, F*2K): u[b, f*2K + j] = 2*pi*coeff[f, j%K]*x[b, f], already lane-dense
    out_ref[...] = jnp.sin(u + phase_ref[...]).astype(out_ref.dtype)


def periodic_forward(x: jax.Array, coefficients: jax.Array, *,
                     block_b: int | None = None, out_dtype=None):
    """Pallas implementation of Periodic.forward.

    x:            (B, F)
    coefficients: (F, K)
    returns:      (B, F, 2*K), last axis = [cos(K) | sin(K)] (matches torch.cat).
    """
    assert x.ndim == 2, "Periodic should only be applied to first layer i.e. ndim==2"
    B, F = x.shape
    F2, K = coefficients.shape
    assert F == F2, f"feature mismatch: x has {F}, coefficients has {F2}"
    D = 2 * K
    FD = F * D
    out_dtype = jnp.dtype(x.dtype) if out_dtype is None else jnp.dtype(out_dtype)

    # --- tiny O(F^2*K) precompute; read once by the kernel and kept resident ---
    c2 = (2.0 * jnp.pi) * coefficients.astype(jnp.float32)            # (F, K)
    cdup = jnp.concatenate([c2, c2], axis=-1)                          # (F, 2K)
    w = (jnp.eye(F, dtype=jnp.float32)[:, :, None] * cdup[None, :, :]).reshape(F, FD)
    phase = jnp.tile(
        jnp.concatenate([jnp.full((K,), 0.5 * jnp.pi, dtype=jnp.float32),
                         jnp.zeros((K,), dtype=jnp.float32)]),
        F,
    ).reshape(1, FD)
    # TODO(synk): for very large feature counts, W (F x F*2K) grows as F^2; tile the
    # feature axis on a second grid dimension instead of keeping W fully resident.

    # --- batch tiling: ~2 MiB lane-dense output tile, sublane-aligned ---
    row_bytes = FD * out_dtype.itemsize
    if block_b is None:
        target_bytes = 2 * 1024 * 1024
        block_b = (target_bytes // max(row_bytes, 1)) // 8 * 8
        block_b = max(8, min(2048, block_b))
    block_b = max(8, (int(block_b) // 8) * 8)
    block_b = min(block_b, _round_up(B, 8))

    b_pad = pl.cdiv(B, block_b) * block_b
    x_p = x if b_pad == B else jnp.pad(x, ((0, b_pad - B), (0, 0)))
    grid = (b_pad // block_b,)

    out_flat = pl.pallas_call(
        _periodic_kernel,
        out_shape=jax.ShapeDtypeStruct((b_pad, FD), out_dtype),
        grid_spec=pltpu.PrefetchScalarGridSpec(
            num_scalar_prefetch=0,
            grid=grid,
            in_specs=[
                pl.BlockSpec((block_b, F), lambda i: (i, 0)),  # batch tile of x
                pl.BlockSpec((F, FD), lambda i: (0, 0)),       # W: fetched once, resident
                pl.BlockSpec((1, FD), lambda i: (0, 0)),       # phase: resident
            ],
            out_specs=pl.BlockSpec((block_b, FD), lambda i: (i, 0)),
        ),
        compiler_params=pltpu.CompilerParams(
            dimension_semantics=("parallel",),
            vmem_limit_bytes=32 * 1024 * 1024,
        ),
    )(x_p, w, phase)

    if b_pad != B:
        out_flat = out_flat[:B]
    return out_flat.reshape(B, F, D)


def periodic_reference(x, coefficients):
    v = 2.0 * jnp.pi * coefficients[None] * x[..., None]
    return jnp.concatenate([jnp.cos(v), jnp.sin(v)], axis=-1)


if __name__ == "__main__":
    key = jax.random.PRNGKey(0)
    k_x, k_c, k_x2, k_c2 = jax.random.split(key, 4)

    # Shapes consistent with the module: batch=8, in_features=4, d_embedding=32 (K=16).
    B, F, d_embedding = 8, 4, 32
    K = d_embedding // 2
    sigma = 1.0

    x = jax.random.normal(k_x, (B, F), dtype=jnp.float32)
    coefficients = sigma * jax.random.normal(k_c, (F, K), dtype=jnp.float32)

    out = jax.block_until_ready(periodic_forward(x, coefficients))
    ref = periodic_reference(x, coefficients)
    assert out.shape == (B, F, 2 * K), out.shape
    assert jnp.allclose(out, ref, atol=2e-5, rtol=2e-5), "mismatch vs reference"

    # Ragged batch / non-power feature count exercises the pad-and-slice path.
    B2, F2, d2 = 13, 6, 16
    x2 = jax.random.normal(k_x2, (B2, F2), dtype=jnp.float32)
    coeffs2 = jax.random.normal(k_c2, (F2, d2 // 2), dtype=jnp.float32)
    out2 = jax.block_until_ready(periodic_forward(x2, coeffs2))
    ref2 = periodic_reference(x2, coeffs2)
    assert out2.shape == (B2, F2, d2), out2.shape
    assert jnp.allclose(out2, ref2, atol=2e-5, rtol=2e-5), "mismatch vs reference (ragged)"

    print("KERNEL_OK")
</pallas_src>

<mosaic_0001>
module attributes {stable_mosaic.version = 11 : i64} {
  func.func @_periodic_kernel(%arg0: i32, %arg1: memref<8x4xf32, #tpu.memory_space<vmem>>, %arg2: memref<4x128xf32, #tpu.memory_space<vmem>>, %arg3: memref<1x128xf32, #tpu.memory_space<vmem>>, %arg4: memref<8x128xf32, #tpu.memory_space<vmem>>) attributes {dimension_semantics = [#tpu.dimension_semantics<parallel>], iteration_bounds = array<i64: 1>, scalar_prefetch = 0 : i64, scratch_operands = 0 : i64, tpu.core_type = #tpu.core_type<tc>, window_params = [{transform_indices = @transform_0, window_bounds = array<i64: 8, 4>}, {pipeline_mode = #tpu.pipeline_mode<synchronous>, transform_indices = @transform_1, window_bounds = array<i64: 4, 128>}, {pipeline_mode = #tpu.pipeline_mode<synchronous>, transform_indices = @transform_2, window_bounds = array<i64: 1, 128>}, {transform_indices = @transform_3, window_bounds = array<i64: 8, 128>}]} {
    %c0 = arith.constant 0 : index
    %c0_0 = arith.constant 0 : index
    %0 = vector.load %arg1[%c0, %c0_0] : memref<8x4xf32, #tpu.memory_space<vmem>>, vector<8x4xf32>
    %c0_1 = arith.constant 0 : index
    %c0_2 = arith.constant 0 : index
    %1 = vector.load %arg2[%c0_1, %c0_2] : memref<4x128xf32, #tpu.memory_space<vmem>>, vector<4x128xf32>
    %cst = arith.constant dense<0.000000e+00> : vector<8x128xf32>
    %2 = tpu.matmul %0, %1, %cst {dimension_numbers = #tpu.dot_dimension_numbers<[1], [0], [0], [1], [0, 0, 1, 1], [], []>, precision = #tpu.contract_precision<fp32>} : vector<8x4xf32>, vector<4x128xf32>, vector<8x128xf32> -> vector<8x128xf32>
    %c0_3 = arith.constant 0 : index
    %c0_4 = arith.constant 0 : index
    %3 = vector.load %arg3[%c0_3, %c0_4] : memref<1x128xf32, #tpu.memory_space<vmem>>, vector<1x128xf32>
    %4 = vector.broadcast %3 : vector<1x128xf32> to vector<8x128xf32>
    %5 = arith.addf %2, %4 : vector<8x128xf32>
    %6 = math.sin %5 : vector<8x128xf32>
    %c0_5 = arith.constant 0 : index
    %c0_6 = arith.constant 0 : index
    %7 = vector.load %arg4[%c0_5, %c0_6] : memref<8x128xf32, #tpu.memory_space<vmem>>, vector<8x128xf32>
    tpu.vector_store %arg4[%c0_5, %c0_6], %6 {strides = array<i32>} : memref<8x128xf32, #tpu.memory_space<vmem>>, vector<8x128xf32>,
    return
  }
  func.func @transform_0(%arg0: i32) -> (i32, i32) {
    %c0_i32 = arith.constant 0 : i32
    %c0_i32_0 = arith.constant 0 : i32
    return %arg0, %c0_i32 : i32, i32
  }
  func.func @transform_1(%arg0: i32) -> (i32, i32) {
    %c0_i32 = arith.constant 0 : i32
    %c0_i32_0 = arith.constant 0 : i32
    %c0_i32_1 = arith.constant 0 : i32
    return %c0_i32, %c0_i32_0 : i32, i32
  }
  func.func @transform_2(%arg0: i32) -> (i32, i32) {
    %c0_i32 = arith.constant 0 : i32
    %c0_i32_0 = arith.constant 0 : i32
    %c0_i32_1 = arith.constant 0 : i32
    return %c0_i32, %c0_i32_0 : i32, i32
  }
  func.func @transform_3(%arg0: i32) -> (i32, i32) {
    %c0_i32 = arith.constant 0 : i32
    %c0_i32_0 = arith.constant 0 : i32
    return %arg0, %c0_i32 : i32, i32
  }
}

</mosaic_0001>

<llo_original>
// kernel: tpu_custom_call.1
$region0: #{tpu_custom_call.1}
  #allocation0 [shape = 'u32[]', space=smem, size = 0x4, offset = 0x4, fixed_abs, tag = 'smem constant byte address 0x4 - core index']
  #allocation1 [shape = 'u32[72,128]{1,0:T(1,128)}', space=vmem, size = 0x9000, scoped, tag = 'internal scratch']
  %s0 = inlined_call_operand.vmem [shape: f32[8,4], index: 0, kind: input, shape index: {}]
  %s1 = inlined_call_operand.vmem [shape: f32[4,128], index: 1, kind: input, shape index: {}]
  %s2 = inlined_call_operand.vmem [shape: f32[1,128], index: 2, kind: input, shape index: {}]
  %s3 = inlined_call_operand.hbm [shape: f32[8,128], index: 3, kind: output, shape index: {}]
  %s4 = sld [smem:[#allocation0]]
  $region22: #{tpu_custom_call.1} parent=0
    _
  %s6 = ssub.s32 1, %s4
  %s7 = scalar_select 0, %s6, %s4
  $region1: #{tpu_custom_call.1} parent=0
    #allocation2 [shape = 'u8[4096]{0}', space=vmem, size = 0x1000, scoped, tag = 'output window, operand 0, single buffered']
    #allocation3 [shape = 's32[1]{0}', space=sflag, size = 0x4, scoped, tag = 'scoped memory for tpu_custom_call.1']
    %8 = vsyncpa [#allocation3], 0
    // Predicated region
    $region2: #{tpu_custom_call.1} parent=1 // pred_check
      _
    $region3: #{tpu_custom_call.1} parent=1 // pred_check_branch
      %10 = sbr.rel (0) target = $region5
    $region4: #{tpu_custom_call.1} parent=1 // pred_region
      _
    $region5: #{tpu_custom_call.1} parent=1 // pred_fallthru
      _
    // Predicated region
    $region6: #{tpu_custom_call.1} parent=1 // pred_check
      _
    $region7: #{tpu_custom_call.1} parent=1 // pred_check_branch
      %12 = sbr.rel (0) target = $region9
    $region8: #{tpu_custom_call.1} parent=1 // pred_region
      _
    $region9: #{tpu_custom_call.1} parent=1 // pred_fallthru
      _
    // Predicated region
    $region10: #{tpu_custom_call.1} parent=1 // pred_check
      _
    $region11: #{tpu_custom_call.1} parent=1 // pred_check_branch
      %14 = sbr.rel (0) target = $region13
    $region12: #{tpu_custom_call.1} parent=1 // pred_region
      _
    $region13: #{tpu_custom_call.1} parent=1 // pred_fallthru
      _
    %v15 = vld [vmem:[%s0] sm:$0xff]
    %v16 = vld [vmem:[%s1] sm:$0xf]
    %v17 = vld [vmem:[%s2] sm:$0x1]
    %v19 = vperm.slane %v17, 0
    %vm21 = vcmask 31744
    %v23 = vsel %vm21, %v15, 0
    %vm25 = vcmask 1043456
    %v27 = vsel %vm25, %v16, 0
    %29 = vmatpush.msra.mxu0 0.0
    %30 = vmatpush.msra.mxu0 0.0
    %31 = vmatpush.msra.mxu0 0.0
    %32 = vmatpush.msra.mxu0 0.0
    %33 = vmatpush.msra.mxu0 0.0
    %34 = vmatpush.msra.mxu0 0.0
    %35 = vmatpush.msra.mxu0 0.0
    %36 = vmatpush.msra.mxu0 0.0
    %37 = vmatpush.msra.mxu0 0.0
    %38 = vmatpush.msra.mxu0 0.0
    %39 = vmatpush.msra.mxu0 0.0
    %40 = vmatpush.msra.mxu0 0.0
    %41 = vmatpush.msra.mxu0 0.0
    %42 = vmatpush.msra.mxu0 0.0
    %43 = vmatpush.msra.mxu0 0.0
    %v44 = vand.u32 %v27, 4294901760
    %45 = vmatpush.msra.mxu0 %v44
    %v46 = vand.u32 %v23, 4294901760
    %v47 = vsub.f32 %v23, %v46
    %v48 = vand.u32 %v47, 4294901760
    %v49 = vsub.f32 %v47, %v48
    %v50 = vand.u32 %v49, 4294901760
    %51 = vmatmul.f32.gmra.mxu0 %v50
    %v52 = vpop.f32.mrf.mxu0
    %v53 = vadd.f32 %v19, %v52
    %54 = vdwg.mxu0
    %55 = vmatpush.msra.mxu0 0.0
    %56 = vmatpush.msra.mxu0 0.0
    %57 = vmatpush.msra.mxu0 0.0
    %58 = vmatpush.msra.mxu0 0.0
    %59 = vmatpush.msra.mxu0 0.0
    %60 = vmatpush.msra.mxu0 0.0
    %61 = vmatpush.msra.mxu0 0.0
    %62 = vmatpush.msra.mxu0 0.0
    %63 = vmatpush.msra.mxu0 0.0
    %64 = vmatpush.msra.mxu0 0.0
    %65 = vmatpush.msra.mxu0 0.0
    %66 = vmatpush.msra.mxu0 0.0
    %67 = vmatpush.msra.mxu0 0.0
    %68 = vmatpush.msra.mxu0 0.0
    %69 = vmatpush.msra.mxu0 0.0
    %v70 = vand.u32 %v27, 4294901760
    %v71 = vsub.f32 %v27, %v70
    %v72 = vand.u32 %v71, 4294901760
    %v73 = vsub.f32 %v71, %v72
    %v74 = vand.u32 %v73, 4294901760
    %75 = vmatpush.msra.mxu0 %v74
    %v76 = vand.u32 %v23, 4294901760
    %77 = vmatmul.f32.gmra.mxu0 %v76
    %v78 = vpop.f32.mrf.mxu0
    %v79 = vadd.f32 %v53, %v78
    %80 = vdwg.mxu0
    %81 = vmatpush.msra.mxu0 0.0
    %82 = vmatpush.msra.mxu0 0.0
    %83 = vmatpush.msra.mxu0 0.0
    %84 = vmatpush.msra.mxu0 0.0
    %85 = vmatpush.msra.mxu0 0.0
    %86 = vmatpush.msra.mxu0 0.0
    %87 = vmatpush.msra.mxu0 0.0
    %88 = vmatpush.msra.mxu0 0.0
    %89 = vmatpush.msra.mxu0 0.0
    %90 = vmatpush.msra.mxu0 0.0
    %91 = vmatpush.msra.mxu0 0.0
    %92 = vmatpush.msra.mxu0 0.0
    %93 = vmatpush.msra.mxu0 0.0
    %94 = vmatpush.msra.mxu0 0.0
    %95 = vmatpush.msra.mxu0 0.0
    %v96 = vand.u32 %v27, 4294901760
    %v97 = vsub.f32 %v27, %v96
    %98 = vmatpush.msra.mxu0 %v97
    %v99 = vand.u32 %v23, 4294901760
    %v100 = vsub.f32 %v23, %v99
    %101 = vmatmul.f32.gmra.mxu0 %v100
    %v102 = vpop.f32.mrf.mxu0
    %v103 = vadd.f32 %v79, %v102
    %104 = vdwg.mxu0
    %105 = vmatpush.msra.mxu0 0.0
    %106 = vmatpush.msra.mxu0 0.0
    %107 = vmatpush.msra.mxu0 0.0
    %108 = vmatpush.msra.mxu0 0.0
    %109 = vmatpush.msra.mxu0 0.0
    %110 = vmatpush.msra.mxu0 0.0
    %111 = vmatpush.msra.mxu0 0.0
    %112 = vmatpush.msra.mxu0 0.0
    %113 = vmatpush.msra.mxu0 0.0
    %114 = vmatpush.msra.mxu0 0.0
    %115 = vmatpush.msra.mxu0 0.0
    %116 = vmatpush.msra.mxu0 0.0
    %117 = vmatpush.msra.mxu0 0.0
    %118 = vmatpush.msra.mxu0 0.0
    %119 = vmatpush.msra.mxu0 0.0
    %v120 = vand.u32 %v27, 4294901760
    %121 = vmatpush.msra.mxu0 %v120
    %v122 = vand.u32 %v23, 4294901760
    %v123 = vsub.f32 %v23, %v122
    %v124 = vand.u32 %v123, 4294901760
    %125 = vmatmul.f32.gmra.mxu0 %v124
    %v126 = vpop.f32.mrf.mxu0
    %v127 = vadd.f32 %v103, %v126
    %128 = vdwg.mxu0
    %129 = vmatpush.msra.mxu0 0.0
    %130 = vmatpush.msra.mxu0 0.0
    %131 = vmatpush.msra.mxu0 0.0
    %132 = vmatpush.msra.mxu0 0.0
    %133 = vmatpush.msra.mxu0 0.0
    %134 = vmatpush.msra.mxu0 0.0
    %135 = vmatpush.msra.mxu0 0.0
    %136 = vmatpush.msra.mxu0 0.0
    %137 = vmatpush.msra.mxu0 0.0
    %138 = vmatpush.msra.mxu0 0.0
    %139 = vmatpush.msra.mxu0 0.0
    %140 = vmatpush.msra.mxu0 0.0
    %141 = vmatpush.msra.mxu0 0.0
    %142 = vmatpush.msra.mxu0 0.0
    %143 = vmatpush.msra.mxu0 0.0
    %v144 = vand.u32 %v27, 4294901760
    %v145 = vsub.f32 %v27, %v144
    %v146 = vand.u32 %v145, 4294901760
    %147 = vmatpush.msra.mxu0 %v146
    %v148 = vand.u32 %v23, 4294901760
    %149 = vmatmul.f32.gmra.mxu0 %v148
    %v150 = vpop.f32.mrf.mxu0
    %v151 = vadd.f32 %v127, %v150
    %152 = vdwg.mxu0
    %153 = vmatpush.msra.mxu0 0.0
    %154 = vmatpush.msra.mxu0 0.0
    %155 = vmatpush.msra.mxu0 0.0
    %156 = vmatpush.msra.mxu0 0.0
    %157 = vmatpush.msra.mxu0 0.0
    %158 = vmatpush.msra.mxu0 0.0
    %159 = vmatpush.msra.mxu0 0.0
    %160 = vmatpush.msra.mxu0 0.0
    %161 = vmatpush.msra.mxu0 0.0
    %162 = vmatpush.msra.mxu0 0.0
    %163 = vmatpush.msra.mxu0 0.0
    %164 = vmatpush.msra.mxu0 0.0
    %165 = vmatpush.msra.mxu0 0.0
    %166 = vmatpush.msra.mxu0 0.0
    %167 = vmatpush.msra.mxu0 0.0
    %v168 = vand.u32 %v27, 4294901760
    %169 = vmatpush.msra.mxu0 %v168
    %v170 = vand.u32 %v23, 4294901760
    %171 = vmatmul.f32.gmra.mxu0 %v170
    %v172 = vpop.f32.mrf.mxu0
    %v173 = vadd.f32 %v151, %v172
    %174 = vdwg.mxu0
    %v175 = vand.u32 2147483647, %v173
    %vm176 = vcmp.le.f32.partialorder %v175, 0.7853982
    %vm177 = vcmp.lt.s32.totalorder %v173, 0
    %v178 = vand.u32 %v173, 2139095040
    %v179 = vshrl.u32 %v178, 23
    %v180 = vsub.s32 %v179, 127
    %v181 = vand.u32 2147483647, %v173
    %v182 = vand.u32 %v181, 8388607
    %v183 = vor.u32 %v182, 8388608
    %v184 = vsub.s32 0, %v183
    %v185 = vadd.s32 %v180, 1
    %vm186 = vcmp.gt.s32.totalorder %v185, 0
    %v187 = vsel %vm186, %v185, 0
    %v188 = vshrl.u32 %v187, 5
    %v189 = vand.u32 %v187, 31
    %v190 = vsub.s32 32, %v189
    %v191 = vshrl.u32 683565275, %v190
    %v192 = vshll.u32 683565275, %v189
    %v193 = vshrl.u32 2475754826, %v190
    %v194 = vor.u32 %v192, %v193
    %v195 = vshll.u32 2475754826, %v189
    %v196 = vshrl.u32 2131351028, %v190
    %v197 = vor.u32 %v195, %v196
    %v198 = vshll.u32 2131351028, %v189
    %v199 = vshrl.u32 2102212464, %v190
    %v200 = vor.u32 %v198, %v199
    %v201 = vshll.u32 2102212464, %v189
    %v202 = vshrl.u32 920167782, %v190
    %v203 = vor.u32 %v201, %v202
    %v204 = vshll.u32 920167782, %v189
    %v205 = vshrl.u32 1326507024, %v190
    %v206 = vor.u32 %v204, %v205
    %vm207 = vcmp.lt.s32.totalorder %v188, 1
    %vm208 = vcmp.lt.s32.totalorder %v188, 2
    %vm209 = vcmp.lt.s32.totalorder %v188, 3
    %vm210 = vcmp.lt.s32.totalorder %v188, 4
    %v211 = vsel %vm207, %v191, %v194
    %v212 = vsel %vm210, %v200, 2102212464
    %v213 = vsel %vm209, %v197, %v212
    %v214 = vsel %vm208, %v211, %v213
    %v215 = vsel %vm207, %v194, %v197
    %v216 = vsel %vm210, %v203, 920167782
    %v217 = vsel %vm209, %v200, %v216
    %v218 = vsel %vm208, %v215, %v217
    %v219 = vsel %vm207, %v197, %v200
    %v220 = vsel %vm210, %v206, 1326507024
    %v221 = vsel %vm209, %v203, %v220
    %v222 = vsel %vm208, %v219, %v221
    %v223 = vshll.u32 %v183, 8
    %v224 = vand.u32 %v223, 65535
    %v225 = vshrl.u32 %v223, 16
    %v226 = vand.u32 %v222, 65535
    %v227 = vshrl.u32 %v222, 16
    %v228 = vmul.u32 %v224, %v226
    %v229 = vmul.u32 %v224, %v227
    %v230 = vmul.u32 %v225, %v226
    %v231 = vmul.u32 %v225, %v227
    %v232 = vshll.u32 %v229, 16
    %v233 = vshrl.u32 %v229, 16
    %v234 = vshll.u32 %v230, 16
    %v235 = vshrl.u32 %v230, 16
    %vm236 = vc.u32 %v228, %v232
    %v237 = vsel %vm236, 1, 0
    %v238 = vadd.s32 %v228, %v232
    %v239 = vadd.s32 %v231, %v237
    %vm240 = vc.u32 %v238, %v234
    %v241 = vsel %vm240, 1, 0
    %v242 = vadd.s32 %v238, %v234
    %v243 = vadd.s32 %v239, %v241
    %v244 = vadd.s32 %v243, %v233
    %v245 = vadd.s32 %v244, %v235
    %v246 = vand.u32 %v223, 65535
    %v247 = vshrl.u32 %v223, 16
    %v248 = vand.u32 %v218, 65535
    %v249 = vshrl.u32 %v218, 16
    %v250 = vmul.u32 %v246, %v248
    %v251 = vmul.u32 %v246, %v249
    %v252 = vmul.u32 %v247, %v248
    %v253 = vmul.u32 %v247, %v249
    %v254 = vshll.u32 %v251, 16
    %v255 = vshrl.u32 %v251, 16
    %v256 = vshll.u32 %v252, 16
    %v257 = vshrl.u32 %v252, 16
    %vm258 = vc.u32 %v250, %v254
    %v259 = vsel %vm258, 1, 0
    %v260 = vadd.s32 %v250, %v254
    %v261 = vadd.s32 %v253, %v259
    %vm262 = vc.u32 %v260, %v256
    %v263 = vsel %vm262, 1, 0
    %v264 = vadd.s32 %v260, %v256
    %v265 = vadd.s32 %v261, %v263
    %v266 = vadd.s32 %v265, %v255
    %v267 = vadd.s32 %v266, %v257
    %v268 = vmul.u32 %v223, %v214
    %v269 = vadd.s32 %v245, %v264
    %vm270 = vc.u32 %v245, %v264
    %v271 = vadd.s32 %v267, 1
    %v272 = vsel %vm270, %v271, %v267
    %v273 = vadd.s32 %v268, %v272
    %v274 = vadd.s32 %v273, 536870912
    %v275 = vshrl.u32 %v274, 30
    %v276 = vshll.u32 %v275, 30
    %v277 = vsub.s32 %v273, %v276
    %vm278 = vcmp.lt.s32.totalorder %v277, 0
    %v279 = vsub.s32 0, %v277
    %v280 = vsel %vm278, %v279, %v277
    %v281 = vclz %v280
    %v282 = vsub.s32 %v281, 2
    %vm283 = vcmp.gt.s32.totalorder 0, %v282
    %v284 = vsel %vm283, 0, %v282
    %v285 = vsub.s32 32, %v284
    %v286 = vshll.u32 %v277, %v284
    %v287 = vshrl.u32 %v269, %v285
    %v288 = vor.u32 %v286, %v287
    %v289 = vsub.s32 4294967266, %v284
    %v290 = vadd.s32 %v289, 127
    %v291 = vshll.u32 %v290, 23
    %v292 = vor.u32 4788187, %v291
    %v293 = vand.u32 2147483647, %v292
    %v295 = vcvt.s32.f32 %v288
    %v296 = vmul.f32 %v295, %v293
    %v297 = vxor.u32 %v296, 2147483648
    %v298 = vsel %vm177, %v297, %v296
    %v299 = vsub.s32 4, %v275
    %v300 = vsel %vm177, %v299, %v275
    %v301 = vsel %vm176, %v173, %v298
    %v302 = vsel %vm176, 0, %v300
    %v303 = vmul.f32 %v301, %v301
    %v304 = vmul.f32 %v303, -0.001358992
    %v305 = vadd.f32 %v304, 0.041655596
    %v306 = vmul.f32 %v303, %v305
    %v307 = vadd.f32 %v306, -0.4999988
    %v308 = vmul.f32 %v303, %v307
    %v309 = vadd.f32 1.0, %v308
    %v310 = vmul.f32 %v301, %v301
    %v311 = vmul.f32 %v310, -0.00019511016
    %v312 = vadd.f32 %v311, 0.008332121
    %v313 = vmul.f32 %v310, %v312
    %v314 = vadd.f32 %v313, -0.16666654
    %v315 = vmul.f32 %v310, %v314
    %v316 = vadd.f32 %v315, 1.0
    %v317 = vmul.f32 %v316, %v301
    %vm318 = vweird.f32 %v173
    %v319 = vadd.s32 %v302, 3
    %v320 = vand.u32 %v319, 3
    %vm321 = vcmp.lt.s32.totalorder %v320, 2
    %vm322 = vcmp.eq.s32.totalorder %v320, 0
    %v323 = vxor.u32 %v317, 2147483648
    %v324 = vsel %vm322, %v309, %v323
    %vm325 = vcmp.eq.s32.totalorder %v320, 2
    %v326 = vxor.u32 %v309, 2147483648
    %v327 = vsel %vm325, %v326, %v317
    %v328 = vsel %vm321, %v324, %v327
    %v329 = vsel %vm318, nan, %v328
    %330 = vst [vmem:[#allocation2] sm:$0xff] %v329
    // Predicated region
    $region14: #{tpu_custom_call.1} parent=1 // pred_check
      _
    $region15: #{tpu_custom_call.1} parent=1 // pred_check_branch
      %332 = sbr.rel (0) target = $region17
    $region16: #{tpu_custom_call.1} parent=1 // pred_region
      %334 = vsyncadd [#allocation3], 0
      %s336 = sshll.u32 [#allocation2], 4
      %s337 = int_to_ptr.vmem [resolvable:$true] %s336
      %s338 = sshll.u32 %s3, 4
      %s339 = int_to_ptr.hbm [resolvable:$true] %s338
      %341 = dma.vmem_to_hbm [thread:$0]  %s337, 128, %s339, [#allocation3]
    $region17: #{tpu_custom_call.1} parent=1 // pred_fallthru
      _
    // Predicated region
    $region18: #{tpu_custom_call.1} parent=1 // pred_check
      _
    $region19: #{tpu_custom_call.1} parent=1 // pred_check_branch
      %343 = sbr.rel (0) target = $region21
    $region20: #{tpu_custom_call.1} parent=1 // pred_region
      %345 = dma.done [#allocation3], 128
    $region21: #{tpu_custom_call.1} parent=1 // pred_fallthru
      _
    %346 = vsyncpa [#allocation3], 1

</llo_original>
